<compile_context>
chip_gen: v6e
topology: v6e:2x2x1
jax: 0.10.0
libtpu: 0.0.40
codegen_flags: <defaults>
</compile_context>

<pallas_src>
import functools

import jax
import jax.numpy as jnp
from jax.experimental import pallas as pl
from jax.experimental.pallas import tpu as pltpu


_TILE_N_MAX = 512  # rows per block (multiple of 16 -> legal for f32 and bf16)


def _round_up(a: int, b: int) -> int:
    return ((a + b - 1) // b) * b


@functools.lru_cache(maxsize=1)
def _tpu_config():
    """Per-generation tile caps, scoped-VMEM limit and TensorCore count."""
    vmem_bytes = 64 * 1024 * 1024          # conservative fallback (v7x-sized)
    try:
        vmem_bytes = int(pltpu.get_tpu_info().vmem_capacity_bytes)
    except Exception:
        pass
    kind = ""
    try:
        kind = jax.devices()[0].device_kind.lower()
    except Exception:
        pass
    two_tc = ("v7" in kind) or ("7x" in kind)      # v7x: 2 TensorCores / chip
    if vmem_bytes >= 100 * 1024 * 1024:            # v5e / v6e: 128 MiB VMEM
        tile_c_max = 4096                          # 512x4096 f32 = 8 MiB block
        vmem_limit = 96 * 1024 * 1024
    else:                                          # v7x: 64 MiB VMEM
        tile_c_max = 2048                          # 512x2048 f32 = 4 MiB block
        vmem_limit = 48 * 1024 * 1024
    return tile_c_max, vmem_limit, two_tc


def _make_kernel(smoothing: float, n_classes: int, tile_c: int):
    confidence = 1.0 - smoothing
    inv_c = 1.0 / float(n_classes)
    has_tail = (n_classes % tile_c) != 0   # static: does the last tile need masking?

    def kernel(x_ref, t_ref, o_ref, m_sc, s_sc, sx_sc, xt_sc):
        c_idx = pl.program_id(1)
        last_c = pl.num_programs(1) - 1

        # --- init running stats at the start of each row tile's class sweep ---
        @pl.when(c_idx == 0)
        def _():
            m_sc[...] = jnp.full_like(m_sc, -jnp.inf)
            s_sc[...] = jnp.zeros_like(s_sc)
            sx_sc[...] = jnp.zeros_like(sx_sc)
            xt_sc[...] = jnp.zeros_like(xt_sc)

        x = x_ref[...].astype(jnp.float32)                 # (tile_n, tile_c)
        # Local column iota + locally-shifted target: the tile offset is folded
        # into the (tile_n, 1) target vector instead of a full-tile add.
        col = jax.lax.broadcasted_iota(jnp.int32, x.shape, 1)
        t_local = t_ref[...] - c_idx * tile_c              # (tile_n, 1) int32

        def update(x_for_max, x_for_sum):
            # Online (streaming) log-sum-exp over the class axis + running sums.
            m_prev = m_sc[...]
            m_new = jnp.maximum(m_prev, jnp.max(x_for_max, axis=-1, keepdims=True))
            s_sc[...] = s_sc[...] * jnp.exp(m_prev - m_new) + jnp.sum(
                jnp.exp(x_for_max - m_new), axis=-1, keepdims=True)
            m_sc[...] = m_new
            sx_sc[...] += jnp.sum(x_for_sum, axis=-1, keepdims=True)
            # Gather x[target] via one-hot compare + select (local indices).
            xt_sc[...] += jnp.sum(jnp.where(col == t_local, x, 0.0),
                                  axis=-1, keepdims=True)

        if not has_tail:
            # C % tile_c == 0 -> no mask work anywhere.
            update(x, x)
        else:
            # Unmasked fast path for all but the last class tile.
            @pl.when(c_idx < last_c)
            def _():
                update(x, x)

            # Masked path only for the last (partial) class tile.
            @pl.when(c_idx == last_c)
            def _():
                limit = n_classes - c_idx * tile_c         # valid cols in tile
                in_range = col < limit
                update(jnp.where(in_range, x, -jnp.inf),   # exp(-inf)=0 drops pads
                       jnp.where(in_range, x, 0.0))

        # --- finalize: per-row loss, written once per row tile ---
        @pl.when(c_idx == last_c)
        def _():
            lse = m_sc[...] + jnp.log(s_sc[...])           # (tile_n, 1)
            nll = lse - xt_sc[...]                         # -logprobs[target]
            smooth = lse - sx_sc[...] * inv_c              # -mean(logprobs)
            o_ref[...] = (confidence * nll + smoothing * smooth).astype(o_ref.dtype)

    return kernel


@functools.partial(jax.jit, static_argnames=("smoothing", "tile_n", "tile_c"))
def label_smoothing_cross_entropy(x, target, smoothing: float = 0.1,
                                  tile_n=None, tile_c=None):
    """x: (N, C) float logits, target: (N,) int class indices -> scalar loss."""
    assert 0.0 <= smoothing < 1.0
    n, c = x.shape
    t2d = target.astype(jnp.int32).reshape(n, 1)

    tile_c_max, vmem_limit, two_tc = _tpu_config()
    itemsize = jnp.dtype(x.dtype).itemsize
    sub = 8 if itemsize >= 4 else 16           # sublane multiple for row tiles

    # --- class (lane) tile ---
    if tile_c is None:
        tile_c = c if c <= tile_c_max else tile_c_max
    elif tile_c != c and tile_c % 128 != 0:
        raise ValueError(f"tile_c={tile_c} must be a multiple of 128 or equal C={c}")

    # --- row (sublane) tile: on 2-TC parts make sure there are >= 2 row tiles
    # so the 'parallel' batch axis actually shards across both TensorCores ---
    if tile_n is None:
        want_tiles = 2 if two_tc else 1
        tile_n = min(_TILE_N_MAX, _round_up(pl.cdiv(n, want_tiles), sub), n)
    elif tile_n != n and tile_n % sub != 0:
        raise ValueError(
            f"tile_n={tile_n} must be a multiple of {sub} for dtype {x.dtype} "
            f"or equal N={n}")

    n_tiles = pl.cdiv(n, tile_n)
    c_tiles = pl.cdiv(c, tile_c)

    # Logits BlockSpec; on v7x ask for 3-deep buffering to hide DMA jitter.
    logits_spec = pl.BlockSpec((tile_n, tile_c), lambda i, k: (i, k))
    if two_tc:
        try:
            logits_spec = pl.BlockSpec((tile_n, tile_c), lambda i, k: (i, k),
                                       pipeline_mode=pl.Buffered(3))
        except TypeError:
            pass  # older jax without pipeline_mode -> default double-buffering

    grid_spec = pltpu.PrefetchScalarGridSpec(
        num_scalar_prefetch=0,
        grid=(n_tiles, c_tiles),
        in_specs=[
            logits_spec,                                        # logits tile
            pl.BlockSpec((tile_n, 1), lambda i, k: (i, 0)),     # targets
        ],
        out_specs=pl.BlockSpec((tile_n, 1), lambda i, k: (i, 0)),  # per-row loss
        scratch_shapes=[pltpu.VMEM((tile_n, 1), jnp.float32)] * 4,
    )

    cost = pl.CostEstimate(
        flops=6 * n * c,
        transcendentals=n * c,
        bytes_accessed=n * c * itemsize + n * 4 + n * 4,
    )

    per_row = pl.pallas_call(
        _make_kernel(smoothing, c, tile_c),
        out_shape=jax.ShapeDtypeStruct((n, 1), jnp.float32),
        grid_spec=grid_spec,
        compiler_params=pltpu.CompilerParams(
            dimension_semantics=("parallel", "arbitrary"),
            vmem_limit_bytes=vmem_limit,
        ),
        cost_estimate=cost,
    )(x, t2d)

    # Final mean over the batch (tiny: N floats) stays in the JAX wrapper.
    return jnp.mean(per_row)


def _reference(x, target, smoothing=0.1):
    confidence = 1.0 - smoothing
    logprobs = jax.nn.log_softmax(x.astype(jnp.float32), axis=-1)
    nll = -jnp.take_along_axis(logprobs, target[:, None].astype(jnp.int32), axis=-1)[:, 0]
    smooth = -jnp.mean(logprobs, axis=-1)
    return jnp.mean(confidence * nll + smoothing * smooth)


if __name__ == "__main__":
    key = jax.random.PRNGKey(0)
    k1, k2, k3, k4, k5, k6 = jax.random.split(key, 6)

    # Case 1: small shape from the module spec (single tile, no-mask fast path).
    N, C = 8, 32
    x = jax.random.normal(k1, (N, C), dtype=jnp.float32)
    t = jax.random.randint(k2, (N,), 0, C, dtype=jnp.int32)
    out = label_smoothing_cross_entropy(x, t, smoothing=0.1)
    jax.block_until_ready(out)
    ref = _reference(x, t, 0.1)
    assert jnp.allclose(out, ref, atol=1e-5, rtol=1e-5), (out, ref)

    # Case 2: tiled/streaming path with partial tiles on BOTH axes
    # (N % tile_n != 0, C % tile_c != 0) -> masked last class tile + online LSE.
    N, C = 20, 200
    x = jax.random.normal(k3, (N, C), dtype=jnp.float32) * 4.0
    t = jax.random.randint(k4, (N,), 0, C, dtype=jnp.int32)
    out = label_smoothing_cross_entropy(x, t, smoothing=0.2, tile_n=8, tile_c=128)
    jax.block_until_ready(out)
    ref = _reference(x, t, 0.2)
    assert jnp.allclose(out, ref, atol=1e-4, rtol=1e-4), (out, ref)

    # Case 3: bf16 logits in HBM (half the bytes), f32 accumulation in-kernel.
    N, C = 16, 256
    xb = jax.random.normal(k5, (N, C), dtype=jnp.float32).astype(jnp.bfloat16)
    t = jax.random.randint(k6, (N,), 0, C, dtype=jnp.int32)
    out = label_smoothing_cross_entropy(xb, t, smoothing=0.1, tile_n=16, tile_c=128)
    jax.block_until_ready(out)
    ref = _reference(xb.astype(jnp.float32), t, 0.1)
    assert jnp.allclose(out, ref, atol=2e-2, rtol=2e-2), (out, ref)

    print("KERNEL_OK")
</pallas_src>

<mosaic_0001>
module attributes {stable_mosaic.version = 11 : i64} {
  func.func @kernel(%arg0: i32, %arg1: i32, %arg2: memref<8x32xf32, #tpu.memory_space<vmem>>, %arg3: memref<8x1xi32, #tpu.memory_space<vmem>>, %arg4: memref<8x1xf32, #tpu.memory_space<vmem>>, %arg5: memref<8x1xf32, #tpu.memory_space<vmem>>, %arg6: memref<8x1xf32, #tpu.memory_space<vmem>>, %arg7: memref<8x1xf32, #tpu.memory_space<vmem>>, %arg8: memref<8x1xf32, #tpu.memory_space<vmem>>) attributes {dimension_semantics = [#tpu.dimension_semantics<parallel>, #tpu.dimension_semantics<arbitrary>], iteration_bounds = array<i64: 1, 1>, scalar_prefetch = 0 : i64, scratch_operands = 4 : i64, tpu.core_type = #tpu.core_type<tc>, window_params = [{transform_indices = @transform_0, window_bounds = array<i64: 8, 32>}, {transform_indices = @transform_1, window_bounds = array<i64: 8, 1>}, {transform_indices = @transform_2, window_bounds = array<i64: 8, 1>}]} {
    %c0_i32 = arith.constant 0 : i32
    %0 = arith.cmpi eq, %arg1, %c0_i32 : i32
    %1 = arith.extui %0 : i1 to i32
    %c0_i32_0 = arith.constant 0 : i32
    %2 = arith.cmpi ne, %1, %c0_i32_0 : i32
    scf.if %2 {
      %cst_26 = arith.constant 0xFF800000 : f32
      %42 = vector.broadcast %cst_26 : f32 to vector<8x1xf32>
      %c0_27 = arith.constant 0 : index
      %c0_28 = arith.constant 0 : index
      %43 = vector.load %arg5[%c0_27, %c0_28] : memref<8x1xf32, #tpu.memory_space<vmem>>, vector<8x1xf32>
      tpu.vector_store %arg5[%c0_27, %c0_28], %42 {strides = array<i32>} : memref<8x1xf32, #tpu.memory_space<vmem>>, vector<8x1xf32>,
      %cst_29 = arith.constant 0.000000e+00 : f32
      %44 = vector.broadcast %cst_29 : f32 to vector<8x1xf32>
      %c0_30 = arith.constant 0 : index
      %c0_31 = arith.constant 0 : index
      %45 = vector.load %arg6[%c0_30, %c0_31] : memref<8x1xf32, #tpu.memory_space<vmem>>, vector<8x1xf32>
      tpu.vector_store %arg6[%c0_30, %c0_31], %44 {strides = array<i32>} : memref<8x1xf32, #tpu.memory_space<vmem>>, vector<8x1xf32>,
      %cst_32 = arith.constant 0.000000e+00 : f32
      %46 = vector.broadcast %cst_32 : f32 to vector<8x1xf32>
      %c0_33 = arith.constant 0 : index
      %c0_34 = arith.constant 0 : index
      %47 = vector.load %arg7[%c0_33, %c0_34] : memref<8x1xf32, #tpu.memory_space<vmem>>, vector<8x1xf32>
      tpu.vector_store %arg7[%c0_33, %c0_34], %46 {strides = array<i32>} : memref<8x1xf32, #tpu.memory_space<vmem>>, vector<8x1xf32>,
      %cst_35 = arith.constant 0.000000e+00 : f32
      %48 = vector.broadcast %cst_35 : f32 to vector<8x1xf32>
      %c0_36 = arith.constant 0 : index
      %c0_37 = arith.constant 0 : index
      %49 = vector.load %arg8[%c0_36, %c0_37] : memref<8x1xf32, #tpu.memory_space<vmem>>, vector<8x1xf32>
      tpu.vector_store %arg8[%c0_36, %c0_37], %48 {strides = array<i32>} : memref<8x1xf32, #tpu.memory_space<vmem>>, vector<8x1xf32>,
    } else {
    }
    %c0 = arith.constant 0 : index
    %c0_1 = arith.constant 0 : index
    %3 = vector.load %arg2[%c0, %c0_1] : memref<8x32xf32, #tpu.memory_space<vmem>>, vector<8x32xf32>
    %4 = tpu.iota {dimensions = array<i32: 1>} : vector<8x32xi32>
    %c0_2 = arith.constant 0 : index
    %c0_3 = arith.constant 0 : index
    %5 = vector.load %arg3[%c0_2, %c0_3] : memref<8x1xi32, #tpu.memory_space<vmem>>, vector<8x1xi32>
    %c32_i32 = arith.constant 32 : i32
    %6 = arith.muli %arg1, %c32_i32 : i32
    %7 = vector.broadcast %6 : i32 to vector<8x1xi32>
    %8 = arith.subi %5, %7 : vector<8x1xi32>
    %c0_4 = arith.constant 0 : index
    %c0_5 = arith.constant 0 : index
    %9 = vector.load %arg5[%c0_4, %c0_5] : memref<8x1xf32, #tpu.memory_space<vmem>>, vector<8x1xf32>
    %cst = arith.constant dense<0xFF800000> : vector<8xf32>
    %10 = vector.multi_reduction <maximumf>, %3, %cst [1] : vector<8x32xf32> to vector<8xf32>
    %11 = vector.shape_cast %10 : vector<8xf32> to vector<8x1xf32>
    %12 = arith.maximumf %9, %11 : vector<8x1xf32>
    %c0_6 = arith.constant 0 : index
    %c0_7 = arith.constant 0 : index
    %13 = vector.load %arg6[%c0_6, %c0_7] : memref<8x1xf32, #tpu.memory_space<vmem>>, vector<8x1xf32>
    %14 = arith.subf %9, %12 : vector<8x1xf32>
    %15 = math.exp %14 : vector<8x1xf32>
    %16 = arith.mulf %13, %15 : vector<8x1xf32>
    %17 = vector.broadcast %12 : vector<8x1xf32> to vector<8x32xf32>
    %18 = arith.subf %3, %17 : vector<8x32xf32>
    %19 = math.exp %18 : vector<8x32xf32>
    %cst_8 = arith.constant dense<0.000000e+00> : vector<8xf32>
    %20 = vector.multi_reduction <add>, %19, %cst_8 [1] : vector<8x32xf32> to vector<8xf32>
    %21 = vector.shape_cast %20 : vector<8xf32> to vector<8x1xf32>
    %22 = arith.addf %16, %21 : vector<8x1xf32>
    %c0_9 = arith.constant 0 : index
    %c0_10 = arith.constant 0 : index
    %23 = vector.load %arg6[%c0_9, %c0_10] : memref<8x1xf32, #tpu.memory_space<vmem>>, vector<8x1xf32>
    tpu.vector_store %arg6[%c0_9, %c0_10], %22 {strides = array<i32>} : memref<8x1xf32, #tpu.memory_space<vmem>>, vector<8x1xf32>,
    %c0_11 = arith.constant 0 : index
    %c0_12 = arith.constant 0 : index
    %24 = vector.load %arg5[%c0_11, %c0_12] : memref<8x1xf32, #tpu.memory_space<vmem>>, vector<8x1xf32>
    tpu.vector_store %arg5[%c0_11, %c0_12], %12 {strides = array<i32>} : memref<8x1xf32, #tpu.memory_space<vmem>>, vector<8x1xf32>,
    %c0_13 = arith.constant 0 : index
    %c0_14 = arith.constant 0 : index
    %25 = vector.load %arg7[%c0_13, %c0_14] : memref<8x1xf32, #tpu.memory_space<vmem>>, vector<8x1xf32>
    %cst_15 = arith.constant dense<0.000000e+00> : vector<8xf32>
    %26 = vector.multi_reduction <add>, %3, %cst_15 [1] : vector<8x32xf32> to vector<8xf32>
    %27 = vector.shape_cast %26 : vector<8xf32> to vector<8x1xf32>
    %28 = arith.addf %25, %27 : vector<8x1xf32>
    %c0_16 = arith.constant 0 : index
    %c0_17 = arith.constant 0 : index
    %29 = vector.load %arg7[%c0_16, %c0_17] : memref<8x1xf32, #tpu.memory_space<vmem>>, vector<8x1xf32>
    tpu.vector_store %arg7[%c0_16, %c0_17], %28 {strides = array<i32>} : memref<8x1xf32, #tpu.memory_space<vmem>>, vector<8x1xf32>,
    %c0_18 = arith.constant 0 : index
    %c0_19 = arith.constant 0 : index
    %30 = vector.load %arg8[%c0_18, %c0_19] : memref<8x1xf32, #tpu.memory_space<vmem>>, vector<8x1xf32>
    %31 = vector.broadcast %8 : vector<8x1xi32> to vector<8x32xi32>
    %32 = arith.cmpi eq, %4, %31 : vector<8x32xi32>
    %cst_20 = arith.constant 0.000000e+00 : f32
    %33 = vector.broadcast %cst_20 : f32 to vector<8x32xf32>
    %34 = arith.select %32, %3, %33 : vector<8x32xi1>, vector<8x32xf32>
    %cst_21 = arith.constant dense<0.000000e+00> : vector<8xf32>
    %35 = vector.multi_reduction <add>, %34, %cst_21 [1] : vector<8x32xf32> to vector<8xf32>
    %36 = vector.shape_cast %35 : vector<8xf32> to vector<8x1xf32>
    %37 = arith.addf %30, %36 : vector<8x1xf32>
    %c0_22 = arith.constant 0 : index
    %c0_23 = arith.constant 0 : index
    %38 = vector.load %arg8[%c0_22, %c0_23] : memref<8x1xf32, #tpu.memory_space<vmem>>, vector<8x1xf32>
    tpu.vector_store %arg8[%c0_22, %c0_23], %37 {strides = array<i32>} : memref<8x1xf32, #tpu.memory_space<vmem>>, vector<8x1xf32>,
    %c0_i32_24 = arith.constant 0 : i32
    %39 = arith.cmpi eq, %arg1, %c0_i32_24 : i32
    %40 = arith.extui %39 : i1 to i32
    %c0_i32_25 = arith.constant 0 : i32
    %41 = arith.cmpi ne, %40, %c0_i32_25 : i32
    scf.if %41 {
      %c0_26 = arith.constant 0 : index
      %c0_27 = arith.constant 0 : index
      %42 = vector.load %arg5[%c0_26, %c0_27] : memref<8x1xf32, #tpu.memory_space<vmem>>, vector<8x1xf32>
      %c0_28 = arith.constant 0 : index
      %c0_29 = arith.constant 0 : index
      %43 = vector.load %arg6[%c0_28, %c0_29] : memref<8x1xf32, #tpu.memory_space<vmem>>, vector<8x1xf32>
      %44 = math.log %43 : vector<8x1xf32>
      %45 = arith.addf %42, %44 : vector<8x1xf32>
      %c0_30 = arith.constant 0 : index
      %c0_31 = arith.constant 0 : index
      %46 = vector.load %arg8[%c0_30, %c0_31] : memref<8x1xf32, #tpu.memory_space<vmem>>, vector<8x1xf32>
      %47 = arith.subf %45, %46 : vector<8x1xf32>
      %c0_32 = arith.constant 0 : index
      %c0_33 = arith.constant 0 : index
      %48 = vector.load %arg7[%c0_32, %c0_33] : memref<8x1xf32, #tpu.memory_space<vmem>>, vector<8x1xf32>
      %cst_34 = arith.constant 3.125000e-02 : f32
      %49 = vector.broadcast %cst_34 : f32 to vector<8x1xf32>
      %50 = arith.mulf %48, %49 : vector<8x1xf32>
      %51 = arith.subf %45, %50 : vector<8x1xf32>
      %cst_35 = arith.constant 0.899999976 : f32
      %52 = vector.broadcast %cst_35 : f32 to vector<8x1xf32>
      %53 = arith.mulf %52, %47 : vector<8x1xf32>
      %cst_36 = arith.constant 1.000000e-01 : f32
      %54 = vector.broadcast %cst_36 : f32 to vector<8x1xf32>
      %55 = arith.mulf %54, %51 : vector<8x1xf32>
      %56 = arith.addf %53, %55 : vector<8x1xf32>
      %c0_37 = arith.constant 0 : index
      %c0_38 = arith.constant 0 : index
      %57 = vector.load %arg4[%c0_37, %c0_38] : memref<8x1xf32, #tpu.memory_space<vmem>>, vector<8x1xf32>
      tpu.vector_store %arg4[%c0_37, %c0_38], %56 {strides = array<i32>} : memref<8x1xf32, #tpu.memory_space<vmem>>, vector<8x1xf32>,
    } else {
    }
    return
  }
  func.func @transform_0(%arg0: i32, %arg1: i32) -> (i32, i32) {
    %c0_i32 = arith.constant 0 : i32
    return %arg0, %arg1 : i32, i32
  }
  func.func @transform_1(%arg0: i32, %arg1: i32) -> (i32, i32) {
    %c0_i32 = arith.constant 0 : i32
    %c0_i32_0 = arith.constant 0 : i32
    return %arg0, %c0_i32 : i32, i32
  }
  func.func @transform_2(%arg0: i32, %arg1: i32) -> (i32, i32) {
    %c0_i32 = arith.constant 0 : i32
    %c0_i32_0 = arith.constant 0 : i32
    return %arg0, %c0_i32 : i32, i32
  }
}

</mosaic_0001>

<llo_original>
// kernel: label_smoothing_cross_entropy.1
$region0: #{label_smoothing_cross_entropy.1}
  #allocation0 [shape = 'u32[]', space=smem, size = 0x4, offset = 0x4, fixed_abs, tag = 'smem constant byte address 0x4 - core index']
  #allocation1 [shape = 'u32[144,128]{1,0:T(1,128)}', space=vmem, size = 0x12000, scoped, tag = 'internal scratch']
  #allocation2 [shape = 'f32[8,1]{1,0:T(8,128)}', space=vmem, size = 0x1000, scoped, tag = 'scratch operand']
  #allocation3 [shape = 'f32[8,1]{1,0:T(8,128)}', space=vmem, size = 0x1000, scoped, tag = 'scratch operand']
  #allocation4 [shape = 'f32[8,1]{1,0:T(8,128)}', space=vmem, size = 0x1000, scoped, tag = 'scratch operand']
  #allocation5 [shape = 'f32[8,1]{1,0:T(8,128)}', space=vmem, size = 0x1000, scoped, tag = 'scratch operand']
  %s0 = inlined_call_operand.vmem [shape: f32[8,32], index: 0, kind: input, shape index: {}]
  %s1 = inlined_call_operand.vmem [shape: s32[8,1], index: 1, kind: input, shape index: {}]
  %s2 = inlined_call_operand.vmem [shape: f32[8,1], index: 2, kind: output, shape index: {}]
  %s3 = sld [smem:[#allocation0]]
  $region26: #{label_smoothing_cross_entropy.1} parent=0
    _
  %s5 = ssub.s32 1, %s3
  %s6 = scalar_select 0, %s5, %s3
  // Predicated region
  $region2: #{label_smoothing_cross_entropy.1} parent=0 // pred_check
    _
  $region3: #{label_smoothing_cross_entropy.1} parent=0 // pred_check_branch
    %8 = sbr.rel (0) target = $region5
  $region4: #{label_smoothing_cross_entropy.1} parent=0 // pred_region
    _
  $region5: #{label_smoothing_cross_entropy.1} parent=0 // pred_fallthru
    _
  // Predicated region
  $region6: #{label_smoothing_cross_entropy.1} parent=0 // pred_check
    _
  $region7: #{label_smoothing_cross_entropy.1} parent=0 // pred_check_branch
    %10 = sbr.rel (0) target = $region9
  $region8: #{label_smoothing_cross_entropy.1} parent=0 // pred_region
    _
  $region9: #{label_smoothing_cross_entropy.1} parent=0 // pred_fallthru
    _
  %p11 = scmp.eq.s32.totalorder 0, 0
  // Predicated region
  $region10: #{label_smoothing_cross_entropy.1} parent=0 // pred_check
    %p12 = pneg %p11
  $region11: #{label_smoothing_cross_entropy.1} parent=0 // pred_check_branch
    %14 = sbr.rel (%p12) target = $region13
  $region12: #{label_smoothing_cross_entropy.1} parent=0 // pred_region
    %vm15 = vcmask 7168
    %16 = vst.msk [vmem:[#allocation2] sm:$0xff] %vm15, -inf
    %17 = vst.msk [vmem:[#allocation3] sm:$0xff] %vm15, 0.0
    %18 = vst.msk [vmem:[#allocation4] sm:$0xff] %vm15, 0.0
    %19 = vst.msk [vmem:[#allocation5] sm:$0xff] %vm15, 0.0
  $region13: #{label_smoothing_cross_entropy.1} parent=0 // pred_fallthru
    _
  %v20 = vld [vmem:[%s0] sm:$0xff]
  %v21 = vlaneseq
  %v22 = vand.u32 %v21, 127
  %v23 = vld [vmem:[%s1] sm:$0xff]
  %s24 = smul.u32 0, 32
  %v25 = vstv %s24
  %v26 = vsub.s32 %v23, %v25
  %v27 = vld [vmem:[#allocation2] sm:$0xff]
  %vm28 = vcmask 261120
  %v29 = vsel %vm28, %v20, -inf
  %30 = vmax.xlane.f32.xlu0 %v29
  %v31 = vpop.xlane.xlu0 %30
  %v32 = vmax.f32 %v27, %v31
  %v33 = vld [vmem:[#allocation3] sm:$0xff]
  %v34 = vsub.f32 %v27, %v32
  %v35 = vmul.f32 %v34, 1.442695
  %v36 = vpow.pop %v35
  %v37 = vmul.f32 %v33, %v36
  %39 = vset.pattern.permute.xlu0 0
  %40 = vperm.xlu0 %39, %v32
  %v41 = vpop.permute.xlu0 %40
  %v43 = vsub.f32 %v20, %v41
  %v44 = vmul.f32 %v43, 1.442695
  %v45 = vpow.pop %v44
  %v46 = vsel %vm28, %v45, 0.0
  %47 = vadd.xlane.f32.xlu0 %v46
  %v48 = vpop.xlane.xlu0 %47
  %v49 = vadd.f32 %v37, %v48
  %vm50 = vcmask 7168
  %51 = vst.msk [vmem:[#allocation3] sm:$0xff] %vm50, %v49
  %52 = vst.msk [vmem:[#allocation2] sm:$0xff] %vm50, %v32
  %v53 = vld [vmem:[#allocation4] sm:$0xff]
  %v54 = vsel %vm28, %v20, 0.0
  %55 = vadd.xlane.f32.xlu0 %v54
  %v56 = vpop.xlane.xlu0 %55
  %v57 = vadd.f32 %v53, %v56
  %58 = vst.msk [vmem:[#allocation4] sm:$0xff] %vm50, %v57
  %v59 = vld [vmem:[#allocation5] sm:$0xff]
  %60 = vset.pattern.permute.xlu0 0
  %61 = vperm.xlu0 %60, %v26
  %v62 = vpop.permute.xlu0 %61
  %vm63 = vcmp.eq.s32.totalorder %v22, %v62
  %v64 = vsel %vm63, %v20, 0.0
  %v65 = vsel %vm28, %v64, 0.0
  %66 = vadd.xlane.f32.xlu0 %v65
  %v67 = vpop.xlane.xlu0 %66
  %v68 = vadd.f32 %v59, %v67
  %69 = vst.msk [vmem:[#allocation5] sm:$0xff] %vm50, %v68
  // Predicated region
  $region14: #{label_smoothing_cross_entropy.1} parent=0 // pred_check
    %p70 = pneg %p11
  $region15: #{label_smoothing_cross_entropy.1} parent=0 // pred_check_branch
    %72 = sbr.rel (%p70) target = $region17
  $region16: #{label_smoothing_cross_entropy.1} parent=0 // pred_region
    %v73 = vld [vmem:[#allocation2] sm:$0xff]
    %v74 = vld [vmem:[#allocation3] sm:$0xff]
    %v75 = vlog2.pop %v74
    %v76 = vmul.f32 %v75, 0.6931472
    %v77 = vadd.f32 %v73, %v76
    %v78 = vld [vmem:[#allocation5] sm:$0xff]
    %v79 = vsub.f32 %v77, %v78
    %v80 = vld [vmem:[#allocation4] sm:$0xff]
    %v81 = vmul.f32 %v80, 0.03125
    %v82 = vsub.f32 %v77, %v81
    %v83 = vmul.f32 %v79, 0.9
    %v84 = vmul.f32 %v82, 0.1
    %v85 = vadd.f32 %v83, %v84
    %86 = vst.msk [vmem:[%s2] sm:$0xff] %vm50, %v85
  $region17: #{label_smoothing_cross_entropy.1} parent=0 // pred_fallthru
    _
  // Predicated region
  $region18: #{label_smoothing_cross_entropy.1} parent=0 // pred_check
    _
  $region19: #{label_smoothing_cross_entropy.1} parent=0 // pred_check_branch
    %88 = sbr.rel (0) target = $region21
  $region20: #{label_smoothing_cross_entropy.1} parent=0 // pred_region
    _
  $region21: #{label_smoothing_cross_entropy.1} parent=0 // pred_fallthru
    _
  // Predicated region
  $region22: #{label_smoothing_cross_entropy.1} parent=0 // pred_check
    _
  $region23: #{label_smoothing_cross_entropy.1} parent=0 // pred_check_branch
    %90 = sbr.rel (0) target = $region25
  $region24: #{label_smoothing_cross_entropy.1} parent=0 // pred_region
    _
  $region25: #{label_smoothing_cross_entropy.1} parent=0 // pred_fallthru
    _

</llo_original>
